<compile_context>
chip_gen: v7x
topology: tpu7x:2x2x1
jax: 0.10.0
libtpu: 0.0.40
codegen_flags: <defaults>
</compile_context>

<pallas_src>
import math

import jax
import jax.numpy as jnp
from jax.experimental import pallas as pl
from jax.experimental.pallas import tpu as pltpu

LN_EPS = 1e-5


def _pick_tile_h(H: int) -> int:
    """Largest multiple-of-8 divisor of H, capped so tiles stay ~1-4 MiB."""
    if H % 8 != 0:
        return H  # single whole-image tile fallback (halo rows are masked off)
    cap = 64 if H > 128 else max(8, H // 2)
    best = 8
    for cand in range(8, cap + 1, 8):
        if H % cand == 0:
            best = cand
    return best


# ---------------------------------------------------------------------------
# Pass 1: per-(batch, channel) pooled sums of (x - mean(x_c)) * inv_std,
# accumulated across H tiles.  The ECA gate is finished on the host side.
# ---------------------------------------------------------------------------
def _pool_kernel(x_ref, pool_ref):
    ht = pl.program_id(1)
    f32 = jnp.float32
    x = x_ref[0].astype(f32)                                  # (C, TH, W)
    C = x.shape[0]

    s1 = jnp.sum(x, axis=0, keepdims=True)                    # (1, TH, W)
    s2 = jnp.sum(x * x, axis=0, keepdims=True)
    mean = s1 * (1.0 / C)
    var = jnp.maximum(s2 * (1.0 / C) - mean * mean, 0.0)
    inv_std = jax.lax.rsqrt(var + LN_EPS)
    z = (x - mean) * inv_std                                  # (C, TH, W)
    part = jnp.sum(jnp.sum(z, axis=2, keepdims=True), axis=1, keepdims=True)

    @pl.when(ht == 0)
    def _():
        pool_ref[...] = jnp.zeros_like(pool_ref)

    pool_ref[0] += part                                       # (C, 1, 1)


# ---------------------------------------------------------------------------
# Pass 2: LayerNorm + depthwise 3x3 conv (gate folded into taps) + fuse.
# ---------------------------------------------------------------------------
def _msef_kernel(x_ref, xtop_ref, xbot_ref, gate_ref, ln_g_ref, ln_b_ref,
                 dw_w_ref, dw_b_ref, o_ref):
    f32 = jnp.float32
    ht = pl.program_id(1)
    nh = pl.num_programs(1)

    x = x_ref[0].astype(f32)                                  # (C, TH, W)
    C, TH, W = x.shape

    ln_g = ln_g_ref[...].astype(f32)                          # (C, 1, 1)
    ln_b = ln_b_ref[...].astype(f32)

    def layer_norm(v):
        # LayerNorm over the leading channel dim, per pixel (v: (C, rows, W)).
        s1 = jnp.sum(v, axis=0, keepdims=True)
        s2 = jnp.sum(v * v, axis=0, keepdims=True)
        mean = s1 * (1.0 / C)
        var = jnp.maximum(s2 * (1.0 / C) - mean * mean, 0.0)
        inv_std = jax.lax.rsqrt(var + LN_EPS)
        return (v - mean) * inv_std * ln_g + ln_b

    xn = layer_norm(x)                                        # (C, TH, W)

    # Halo rows: last row of the 8-row block above / first row of the block
    # below.  Masked to zero at the image borders (== conv zero padding).
    halo_bh = xtop_ref.shape[2]
    top = xtop_ref[0, :, halo_bh - 1:halo_bh, :].astype(f32)  # (C, 1, W)
    bot = xbot_ref[0, :, 0:1, :].astype(f32)                  # (C, 1, W)
    top_valid = (ht > 0).astype(f32)
    bot_valid = (ht < nh - 1).astype(f32)
    xn_top = layer_norm(top) * top_valid
    xn_bot = layer_norm(bot) * bot_valid

    # ---- fold the ECA gate into the depthwise taps & bias (tiny (C,1,1) ops)
    gate = gate_ref[0].astype(f32)                            # (C, 1, 1)
    w9 = dw_w_ref[...].astype(f32)                            # (9, C, 1, 1)
    tap = [w9[k] * gate for k in range(9)]
    bias = dw_b_ref[...].astype(f32) * gate                   # (C, 1, 1)

    # ---- column shifts (zero padded):  s[..., w] = t[..., w + dw] ----------
    lane_aligned = (W % 128 == 0)
    if lane_aligned:
        col = jax.lax.broadcasted_iota(jnp.int32, (1, 1, W), 2)
        keep_l = (col >= 1).astype(f32)          # valid lanes when reading w-1
        keep_r = (col <= W - 2).astype(f32)      # valid lanes when reading w+1

    def shift_w(t, dw):
        if dw == 0:
            return t
        if lane_aligned:
            # Lane roll on the (otherwise idle) XLU + 0/1 lane mask.
            rolled = pltpu.roll(t, (-dw) % W, axis=2)
            return rolled * (keep_l if dw == -1 else keep_r)
        # Small / unaligned widths (unit test W=16): zero-column concat.
        zc = jnp.zeros(t.shape[:2] + (1,), f32)
        if dw == -1:
            return jnp.concatenate([zc, t[:, :, :W - 1]], axis=2)
        return jnp.concatenate([t[:, :, 1:], zc], axis=2)

    def hpass(v, kh):
        # Horizontal partial sum for tap row kh: sum_dw w[kh,dw] * v(., w+dw)
        return (shift_w(v, -1) * tap[kh * 3 + 0]
                + v * tap[kh * 3 + 1]
                + shift_w(v, 1) * tap[kh * 3 + 2])

    g_m1 = hpass(xn, 0)                 # consumed at output row h   (from h-1)
    g_0 = hpass(xn, 1)
    g_p1 = hpass(xn, 2)                 # consumed at output row h   (from h+1)
    g_top = hpass(xn_top, 0)            # (C, 1, W) — row above the tile
    g_bot = hpass(xn_bot, 2)            # (C, 1, W) — row below the tile

    r_m1 = jnp.concatenate([g_top, g_m1[:, :TH - 1, :]], axis=1)
    r_p1 = jnp.concatenate([g_p1[:, 1:, :], g_bot], axis=1)

    conv = r_m1 + g_0 + r_p1 + bias     # = gate * (depthwise_conv(x_norm) + b)
    o_ref[0] = (conv * xn + x).astype(o_ref.dtype)


# ---------------------------------------------------------------------------
# Wrapper
# ---------------------------------------------------------------------------
def msef_block(x, ln_g, ln_b, dw_w_oihw, dw_b, eca_w):
    """MSEFBlock forward. x: (B, C, H, W) NCHW; ln_g/ln_b/dw_b/eca_w: (C,);
    dw_w_oihw: (C, 1, 3, 3) depthwise OIHW."""
    B, C, H, W = x.shape
    f32 = jnp.float32
    TILE_H = _pick_tile_h(H)
    HT = H // TILE_H

    # ---- pass 1: pooled sums of the (non-affine) normalized activations ----
    pooled_raw = pl.pallas_call(
        _pool_kernel,
        out_shape=jax.ShapeDtypeStruct((B, C, 1, 1), f32),
        grid_spec=pltpu.PrefetchScalarGridSpec(
            num_scalar_prefetch=0,
            grid=(B, HT),
            in_specs=[pl.BlockSpec((1, C, TILE_H, W), lambda b, h: (b, 0, h, 0))],
            out_specs=pl.BlockSpec((1, C, 1, 1), lambda b, h: (b, 0, 0, 0)),
        ),
        compiler_params=pltpu.CompilerParams(
            dimension_semantics=("parallel", "arbitrary"),
            vmem_limit_bytes=48 * 1024 * 1024,
        ),
    )(x)

    # ECA gate.  The PyTorch ECABlock uses Conv1d(C, C, k, groups=C) on the
    # length-1 pooled sequence, which reduces exactly to the per-channel
    # centre-tap scalar.  pooled mean of x_norm = g * raw/(H*W) + b.
    pooled = pooled_raw.reshape(B, C) * ln_g[None, :] * (1.0 / (H * W)) + ln_b[None, :]
    gate = jax.nn.sigmoid(pooled * eca_w[None, :]).astype(f32).reshape(B, C, 1, 1)

    # Param packing (parameter-sized reshapes only — no image transposes).
    ln_g_p = ln_g.reshape(C, 1, 1).astype(f32)
    ln_b_p = ln_b.reshape(C, 1, 1).astype(f32)
    dw_b_p = dw_b.reshape(C, 1, 1).astype(f32)
    # (C, 1, 3, 3) depthwise OIHW -> (9, C, 1, 1): tap kh*3+kw per channel.
    dw_taps = jnp.transpose(dw_w_oihw[:, 0], (1, 2, 0)).reshape(9, C, 1, 1).astype(f32)

    # Halo specs: 8-row-aligned blocks of the same input array with clamped
    # index maps (the unwanted side is masked to zero in-kernel).
    if TILE_H % 8 == 0 and H % 8 == 0:
        halo_bh = 8
        th8 = TILE_H // 8
        nb8 = H // 8
        top_map = lambda b, h: (b, 0, jnp.maximum(h * th8 - 1, 0), 0)
        bot_map = lambda b, h: (b, 0, jnp.minimum(h * th8 + th8, nb8 - 1), 0)
    else:
        halo_bh = TILE_H   # single-tile fallback; halo contributions masked off
        top_map = lambda b, h: (b, 0, 0, 0)
        bot_map = lambda b, h: (b, 0, 0, 0)

    return pl.pallas_call(
        _msef_kernel,
        out_shape=jax.ShapeDtypeStruct((B, C, H, W), x.dtype),
        grid_spec=pltpu.PrefetchScalarGridSpec(
            num_scalar_prefetch=0,
            grid=(B, HT),
            in_specs=[
                pl.BlockSpec((1, C, TILE_H, W), lambda b, h: (b, 0, h, 0)),
                pl.BlockSpec((1, C, halo_bh, W), top_map),
                pl.BlockSpec((1, C, halo_bh, W), bot_map),
                pl.BlockSpec((1, C, 1, 1), lambda b, h: (b, 0, 0, 0)),
                pl.BlockSpec((C, 1, 1), lambda b, h: (0, 0, 0)),
                pl.BlockSpec((C, 1, 1), lambda b, h: (0, 0, 0)),
                pl.BlockSpec((9, C, 1, 1), lambda b, h: (0, 0, 0, 0)),
                pl.BlockSpec((C, 1, 1), lambda b, h: (0, 0, 0)),
            ],
            out_specs=pl.BlockSpec((1, C, TILE_H, W), lambda b, h: (b, 0, h, 0)),
        ),
        compiler_params=pltpu.CompilerParams(
            dimension_semantics=("parallel", "parallel"),
            vmem_limit_bytes=48 * 1024 * 1024,
        ),
    )(x, x, x, gate, ln_g_p, ln_b_p, dw_taps, dw_b_p)


# ---------------------------------------------------------------------------
# Pure-JAX reference mirroring the PyTorch MSEFBlock forward.
# ---------------------------------------------------------------------------
def reference(x_nchw, ln_g, ln_b, dw_w_oihw, dw_b, eca_w):
    C = x_nchw.shape[1]
    xn = jnp.transpose(x_nchw, (0, 2, 3, 1))
    mean = xn.mean(-1, keepdims=True)
    var = ((xn - mean) ** 2).mean(-1, keepdims=True)
    x_norm = (xn - mean) / jnp.sqrt(var + LN_EPS) * ln_g + ln_b
    x_norm = jnp.transpose(x_norm, (0, 3, 1, 2))             # NCHW
    x1 = jax.lax.conv_general_dilated(
        x_norm, dw_w_oihw, window_strides=(1, 1), padding="SAME",
        feature_group_count=C,
        dimension_numbers=("NCHW", "OIHW", "NCHW"),
    ) + dw_b[None, :, None, None]
    pooled = x_norm.mean(axis=(2, 3))                        # (B, C)
    gate = jax.nn.sigmoid(pooled * eca_w[None, :])[:, :, None, None]
    x2 = x_norm * gate
    return x1 * x2 + x_nchw


if __name__ == "__main__":
    def run_case(key, B, C, H, W):
        k_x, k_dw, k_eca, k_g, k_b = jax.random.split(key, 5)
        x = jax.random.normal(k_x, (B, C, H, W), dtype=jnp.float32)

        # LayerNorm params (perturbed from the PyTorch defaults to exercise
        # the affine / gate-folding math).
        ln_g = 1.0 + 0.1 * jax.random.normal(k_g, (C,), jnp.float32)
        ln_b = 0.1 * jax.random.normal(k_b, (C,), jnp.float32)

        # Depthwise 3x3 conv: kaiming_uniform (fan_in = 9, relu gain).
        bound_dw = math.sqrt(2.0) * math.sqrt(3.0 / 9.0)
        dw_w_oihw = jax.random.uniform(
            k_dw, (C, 1, 3, 3), jnp.float32, minval=-bound_dw, maxval=bound_dw)
        dw_b = 0.05 * jnp.arange(C, dtype=jnp.float32)

        # ECA grouped Conv1d weight (C, 1, k); only the centre tap matters for
        # the length-1 pooled sequence.
        k_size = int(abs((math.log2(C) + 1) / 2))
        k_size = k_size if k_size % 2 else k_size + 1
        bound_eca = math.sqrt(2.0) * math.sqrt(3.0 / k_size)
        eca_full = jax.random.uniform(
            k_eca, (C, 1, k_size), jnp.float32, minval=-bound_eca, maxval=bound_eca)
        eca_w = eca_full[:, 0, (k_size - 1) // 2]            # (C,)

        out = jax.block_until_ready(msef_block(x, ln_g, ln_b, dw_w_oihw, dw_b, eca_w))
        ref = jax.block_until_ready(reference(x, ln_g, ln_b, dw_w_oihw, dw_b, eca_w))
        assert out.shape == (B, C, H, W)
        err = float(jnp.max(jnp.abs(out - ref)))
        assert jnp.allclose(out, ref, rtol=1e-4, atol=1e-4), \
            f"mismatch at {(B, C, H, W)}: max abs err {err}"

    key = jax.random.PRNGKey(0)
    k1, k2 = jax.random.split(key)
    # Small/unaligned width (W < 128): zero-column-concat path, 2 H-tiles + halos.
    run_case(k1, 2, 4, 16, 16)
    # Lane-aligned width (W = 128): pltpu.roll column-shift path, 2 H-tiles + halos.
    run_case(k2, 1, 8, 32, 128)
    print("KERNEL_OK")
</pallas_src>

<mosaic_0001>
module attributes {stable_mosaic.version = 11 : i64} {
  func.func @_pool_kernel(%arg0: i32, %arg1: i32, %arg2: memref<1x4x8x16xf32, #tpu.memory_space<vmem>>, %arg3: memref<1x4x1x1xf32, #tpu.memory_space<vmem>>) attributes {dimension_semantics = [#tpu.dimension_semantics<parallel>, #tpu.dimension_semantics<arbitrary>], iteration_bounds = array<i64: 2, 2>, scalar_prefetch = 0 : i64, scratch_operands = 0 : i64, tpu.core_type = #tpu.core_type<tc>, window_params = [{transform_indices = @transform_0, window_bounds = array<i64: 1, 4, 8, 16>}, {transform_indices = @transform_1, window_bounds = array<i64: 1, 4, 1, 1>}]} {
    %c0 = arith.constant 0 : index
    %c0_0 = arith.constant 0 : index
    %c0_1 = arith.constant 0 : index
    %c0_2 = arith.constant 0 : index
    %0 = vector.load %arg2[%c0, %c0_0, %c0_1, %c0_2] : memref<1x4x8x16xf32, #tpu.memory_space<vmem>>, vector<1x4x8x16xf32>
    %1 = vector.shape_cast %0 : vector<1x4x8x16xf32> to vector<4x8x16xf32>
    %cst = arith.constant dense<0.000000e+00> : vector<8x16xf32>
    %2 = vector.multi_reduction <add>, %1, %cst [0] : vector<4x8x16xf32> to vector<8x16xf32>
    %3 = vector.shape_cast %2 : vector<8x16xf32> to vector<1x8x16xf32>
    %4 = arith.mulf %1, %1 : vector<4x8x16xf32>
    %cst_3 = arith.constant dense<0.000000e+00> : vector<8x16xf32>
    %5 = vector.multi_reduction <add>, %4, %cst_3 [0] : vector<4x8x16xf32> to vector<8x16xf32>
    %6 = vector.shape_cast %5 : vector<8x16xf32> to vector<1x8x16xf32>
    %cst_4 = arith.constant 2.500000e-01 : f32
    %7 = vector.broadcast %cst_4 : f32 to vector<1x8x16xf32>
    %8 = arith.mulf %3, %7 : vector<1x8x16xf32>
    %cst_5 = arith.constant 2.500000e-01 : f32
    %9 = vector.broadcast %cst_5 : f32 to vector<1x8x16xf32>
    %10 = arith.mulf %6, %9 : vector<1x8x16xf32>
    %11 = arith.mulf %8, %8 : vector<1x8x16xf32>
    %12 = arith.subf %10, %11 : vector<1x8x16xf32>
    %cst_6 = arith.constant 0.000000e+00 : f32
    %13 = vector.broadcast %cst_6 : f32 to vector<1x8x16xf32>
    %14 = arith.maximumf %12, %13 : vector<1x8x16xf32>
    %cst_7 = arith.constant 9.99999974E-6 : f32
    %15 = vector.broadcast %cst_7 : f32 to vector<1x8x16xf32>
    %16 = arith.addf %14, %15 : vector<1x8x16xf32>
    %17 = math.rsqrt %16 : vector<1x8x16xf32>
    %18 = vector.broadcast %8 : vector<1x8x16xf32> to vector<4x8x16xf32>
    %19 = arith.subf %1, %18 : vector<4x8x16xf32>
    %20 = vector.broadcast %17 : vector<1x8x16xf32> to vector<4x8x16xf32>
    %21 = arith.mulf %19, %20 : vector<4x8x16xf32>
    %cst_8 = arith.constant dense<0.000000e+00> : vector<4x8xf32>
    %22 = vector.multi_reduction <add>, %21, %cst_8 [2] : vector<4x8x16xf32> to vector<4x8xf32>
    %23 = vector.shape_cast %22 : vector<4x8xf32> to vector<4x8x1xf32>
    %cst_9 = arith.constant dense<0.000000e+00> : vector<4x1xf32>
    %24 = vector.multi_reduction <add>, %23, %cst_9 [1] : vector<4x8x1xf32> to vector<4x1xf32>
    %25 = vector.shape_cast %24 : vector<4x1xf32> to vector<4x1x1xf32>
    %c0_i32 = arith.constant 0 : i32
    %26 = arith.cmpi eq, %arg1, %c0_i32 : i32
    %27 = arith.extui %26 : i1 to i32
    %c0_i32_10 = arith.constant 0 : i32
    %28 = arith.cmpi ne, %27, %c0_i32_10 : i32
    scf.if %28 {
      %cst_19 = arith.constant 0.000000e+00 : f32
      %35 = vector.broadcast %cst_19 : f32 to vector<1x4x1x1xf32>
      %c0_20 = arith.constant 0 : index
      %c0_21 = arith.constant 0 : index
      %c0_22 = arith.constant 0 : index
      %c0_23 = arith.constant 0 : index
      %36 = vector.load %arg3[%c0_20, %c0_21, %c0_22, %c0_23] : memref<1x4x1x1xf32, #tpu.memory_space<vmem>>, vector<1x4x1x1xf32>
      tpu.vector_store %arg3[%c0_20, %c0_21, %c0_22, %c0_23], %35 {strides = array<i32>} : memref<1x4x1x1xf32, #tpu.memory_space<vmem>>, vector<1x4x1x1xf32>,
    } else {
    }
    %c0_11 = arith.constant 0 : index
    %c0_12 = arith.constant 0 : index
    %c0_13 = arith.constant 0 : index
    %c0_14 = arith.constant 0 : index
    %29 = vector.load %arg3[%c0_11, %c0_12, %c0_13, %c0_14] : memref<1x4x1x1xf32, #tpu.memory_space<vmem>>, vector<1x4x1x1xf32>
    %30 = vector.shape_cast %29 : vector<1x4x1x1xf32> to vector<4x1x1xf32>
    %31 = arith.addf %30, %25 : vector<4x1x1xf32>
    %c0_15 = arith.constant 0 : index
    %c0_16 = arith.constant 0 : index
    %c0_17 = arith.constant 0 : index
    %c0_18 = arith.constant 0 : index
    %32 = vector.load %arg3[%c0_15, %c0_16, %c0_17, %c0_18] : memref<1x4x1x1xf32, #tpu.memory_space<vmem>>, vector<1x4x1x1xf32>
    %33 = vector.shape_cast %32 : vector<1x4x1x1xf32> to vector<4x1x1xf32>
    %34 = vector.shape_cast %31 : vector<4x1x1xf32> to vector<1x4x1x1xf32>
    tpu.vector_store %arg3[%c0_15, %c0_16, %c0_17, %c0_18], %34 {strides = array<i32>} : memref<1x4x1x1xf32, #tpu.memory_space<vmem>>, vector<1x4x1x1xf32>,
    return
  }
  func.func @transform_0(%arg0: i32, %arg1: i32) -> (i32, i32, i32, i32) {
    %c0_i32 = arith.constant 0 : i32
    %c0_i32_0 = arith.constant 0 : i32
    %c0_i32_1 = arith.constant 0 : i32
    return %arg0, %c0_i32, %arg1, %c0_i32_0 : i32, i32, i32, i32
  }
  func.func @transform_1(%arg0: i32, %arg1: i32) -> (i32, i32, i32, i32) {
    %c0_i32 = arith.constant 0 : i32
    %c0_i32_0 = arith.constant 0 : i32
    %c0_i32_1 = arith.constant 0 : i32
    %c0_i32_2 = arith.constant 0 : i32
    return %arg0, %c0_i32, %c0_i32_0, %c0_i32_1 : i32, i32, i32, i32
  }
}

</mosaic_0001>

<llo_original>
// kernel: tpu_custom_call.1
$region0: #{tpu_custom_call.1}
  #allocation0 [shape = 'u32[]', space=smem, size = 0x4, offset = 0x4, fixed_abs, tag = 'smem constant byte address 0x4 - core index']
  #allocation1 [shape = 'u32[144,128]{1,0:T(1,128)}', space=vmem, size = 0x12000, scoped, tag = 'internal scratch']
  %s0 = inlined_call_operand.hbm [shape: f32[2,4,16,16], index: 0, kind: input, shape index: {}]
  %s1 = inlined_call_operand.vmem [shape: f32[2,4,1,1], index: 1, kind: output, shape index: {}]
  %s2 = sld [smem:[#allocation0]]
  $region45: #{tpu_custom_call.1} parent=0
    _
  %s4 = ssub.s32 1, %s2
  %s5 = scalar_select 0, %s4, %s2
  $region1: #{tpu_custom_call.1} parent=0
    #allocation2 [shape = 'u8[32768]{0}', space=vmem, size = 0x8000, scoped, tag = 'input window, operand 0']
    #allocation3 [shape = 's32[2]{0}', space=sflag, size = 0x8, scoped, tag = 'scoped memory for tpu_custom_call.1']
    %6 = vsyncpa [#allocation3], 0
    %s7 = scalar_lea.sflag [#allocation3], 1
    %8 = vsyncpa %s7, 0
    loop: start=0, step=1, limit=6
    $region2: #{tpu_custom_call.1} parent=1 // loop_pre_header
      _
    $region3: #{tpu_custom_call.1} parent=1 // loop_header
      %s10 = sphi 0, %s14
      %p11 = scmp.ge.s32.totalorder %s10, 6
      %s17 = sphi 0, %s29
      %s18 = sphi 0, %s25
      %s19 = sphi 0, %s17
      %s20 = sphi 0, %s18
      %s21 = sphi 0, %s19
      %s22 = sphi 0, %s20
      %s34 = sphi 0, %s36
      %s37 = sphi 0, %s34
      %s38 = sphi 0, %s37
      %s54 = sphi 0, %s38
      %s60 = sphi 0, %s62
      %s63 = sphi 0, %s60
      %s64 = sphi 0, %s63
      %s80 = sphi 0, %s64
    $region4: #{tpu_custom_call.1} parent=1 // loop_header_branch
      %13 = sbr.rel (%p11) target = $region8
    $region5: #{tpu_custom_call.1} parent=1 // loop_body
      %s15 = ssub.s32 %s10, 1
      %s16 = ssub.s32 %s10, 2
      %s23 = sadd.s32 1, %s18
      %p24 = scmp.ge.s32.totalorder %s23, 2
      %s25 = scalar_select %p24, 0, %s23
      %s26 = sadd.s32 1, %s17
      %s27 = scalar_select %p24, %s26, %s17
      %p28 = scmp.ge.s32.totalorder %s27, 2
      %s29 = scalar_select %p28, 0, %s27
      %s30 = ssub.s32 %s17, %s29
      %s31 = ssub.s32 %s18, %s25
      %s32 = sor.u32 %s30, %s31
      %p33 = scmp.eq.s32.totalorder %s32, 0
      %s35 = sadd.s32 %s34, 1
      %s36 = scalar_select %p33, %s34, %s35
      %p39 = pneg %p33
      %p40 = scmp.eq.s32.totalorder %s10, 3
      %p41 = por %p39, %p40
      %p42 = scmp.ne.s32.totalorder %s34, %s37
      %p43 = scmp.eq.s32.totalorder %s10, 0
      %p44 = por %p42, %p43
      %p45 = scmp.ne.s32.totalorder %s34, %s37
      %p46 = scmp.eq.s32.totalorder %s15, 3
      %p47 = por %p45, %p46
      %p48 = scmp.ne.s32.totalorder %s37, %s38
      %p49 = scmp.eq.s32.totalorder %s15, 0
      %p50 = por %p48, %p49
      %p51 = scmp.ne.s32.totalorder %s37, %s38
      %p52 = scmp.eq.s32.totalorder %s16, 3
      %p53 = por %p51, %p52
      %p55 = scmp.ne.s32.totalorder %s38, %s54
      %p56 = scmp.eq.s32.totalorder %s16, 0
      %p57 = por %p55, %p56
      %s58 = ssub.s32 %s17, %s29
      %p59 = scmp.eq.s32.totalorder %s58, 0
      %s61 = sadd.s32 %s60, 1
      %s62 = scalar_select %p59, %s60, %s61
      %p65 = pneg %p59
      %p66 = scmp.eq.s32.totalorder %s10, 3
      %p67 = por %p65, %p66
      %p68 = scmp.ne.s32.totalorder %s60, %s63
      %p69 = scmp.eq.s32.totalorder %s10, 0
      %p70 = por %p68, %p69
      %p71 = scmp.ne.s32.totalorder %s60, %s63
      %p72 = scmp.eq.s32.totalorder %s15, 3
      %p73 = por %p71, %p72
      %p74 = scmp.ne.s32.totalorder %s63, %s64
      %p75 = scmp.eq.s32.totalorder %s15, 0
      %p76 = por %p74, %p75
      %p77 = scmp.ne.s32.totalorder %s63, %s64
      %p78 = scmp.eq.s32.totalorder %s16, 3
      %p79 = por %p77, %p78
      %p81 = scmp.ne.s32.totalorder %s64, %s80
      %p82 = scmp.eq.s32.totalorder %s16, 0
      %p83 = por %p81, %p82
      %p84 = scmp.le.s32.totalorder 1, %s10
      %p85 = scmp.lt.s32.totalorder %s10, 5
      %p86 = pnand %p84, %p85
      %p87 = pneg %p86
      // Predicated region
      $region9: #{tpu_custom_call.1} parent=5 // pred_check
        _
      $region10: #{tpu_custom_call.1} parent=5 // pred_check_branch
        %89 = sbr.rel (%p86) target = $region12
      $region11: #{tpu_custom_call.1} parent=5 // pred_region
        %s90 = ssub.s32 %s10, 1
      $region12: #{tpu_custom_call.1} parent=5 // pred_fallthru
        _
      %p91 = scmp.lt.s32.totalorder %s10, 4
      // Predicated region
      $region13: #{tpu_custom_call.1} parent=5 // pred_check
        %p92 = pneg %p91
      $region14: #{tpu_custom_call.1} parent=5 // pred_check_branch
        %94 = sbr.rel (%p92) target = $region16
      $region15: #{tpu_custom_call.1} parent=5 // pred_region
        // Predicated region
        $region17: #{tpu_custom_call.1} parent=15 // pred_check
          %p95 = pneg %p44
        $region18: #{tpu_custom_call.1} parent=15 // pred_check_branch
          %97 = sbr.rel (%p95) target = $region20
        $region19: #{tpu_custom_call.1} parent=15 // pred_region
          %s98 = sand.u32 %s34, 1
          %s99 = scalar_lea.sflag [#allocation3], %s98
          %s100 = sand.u32 %s34, 1
          %s101 = smul.addr %s100, 32
          %s102 = scalar_lea.vmem [#allocation2], %s101
          %s104 = ssub.s32 512, 512
          %105 = vsyncadd %s99, %s104
          %s106 = smul.addr %s17, 8
          %s107 = sadd.s32 %s18, %s106
          %s108 = smul.addr %s107, 128
          %s109 = scalar_lea.hbm %s0, %s108
          %s110 = sshll.u32 %s102, 4
          %s111 = int_to_ptr.vmem [resolvable:$true] %s110
          %116 = dma.hbm_to_vmem [thread:$0]  %s109, 512, %s111, %s99, 256, 128, 8
        $region20: #{tpu_custom_call.1} parent=15 // pred_fallthru
          _
      $region16: #{tpu_custom_call.1} parent=5 // pred_fallthru
        _
      %p117 = scmp.le.s32.totalorder 1, %s10
      %p118 = scmp.lt.s32.totalorder %s10, 5
      %p119 = pnand %p117, %p118
      %p120 = pneg %p119
      // Predicated region
      $region21: #{tpu_custom_call.1} parent=5 // pred_check
        _
      $region22: #{tpu_custom_call.1} parent=5 // pred_check_branch
        %122 = sbr.rel (%p119) target = $region24
      $region23: #{tpu_custom_call.1} parent=5 // pred_region
        %s123 = ssub.s32 %s10, 1
        %s124 = sand.u32 %s37, 1
        %s125 = scalar_lea.sflag [#allocation3], %s124
        %s126 = sand.u32 %s37, 1
        %s127 = smul.addr %s126, 32
        %s128 = scalar_lea.vmem [#allocation2], %s127
        // Predicated region
        $region25: #{tpu_custom_call.1} parent=23 // pred_check
          %p129 = pneg %p50
        $region26: #{tpu_custom_call.1} parent=23 // pred_check_branch
          %131 = sbr.rel (%p129) target = $region28
        $region27: #{tpu_custom_call.1} parent=23 // pred_region
          %132 = dma.done %s125, 512
        $region28: #{tpu_custom_call.1} parent=23 // pred_fallthru
          _
        %s133 = sand.u32 %s37, 1
        %s134 = scalar_lea.sflag [#allocation3], %s133
        %s135 = sand.u32 %s37, 1
        %s136 = smul.addr %s135, 32
        %s137 = scalar_lea.vmem [#allocation2], %s136
        %p138 = pneg %p50
        %p139 = pneg %p47
        %p140 = pneg %p76
        %p141 = pneg %p73
        %p142 = scmp.lt.s32.totalorder %s19, 1
        %s143 = scalar_select %p142, %s19, 1
        %s144 = smul.addr %s143, 4
        %s145 = scalar_lea.vmem %s1, %s144
        %p146 = scmp.lt.s32.totalorder %s19, 1
        %s147 = scalar_select %p146, %s19, 1
        %s148 = smul.addr %s147, 4
        %s149 = scalar_lea.vmem %s1, %s148
        %v150 = vld [vmem:[%s128] sm:$0xff]
        %v151 = vld [vmem:[%s128 + $0x8] sm:$0xff]
        %v152 = vld [vmem:[%s128 + $0x10] sm:$0xff]
        %v153 = vld [vmem:[%s128 + $0x18] sm:$0xff]
        %vm154 = vcmask 130048
        %v155 = vsel %vm154, %v150, 0.0
        %v156 = vsel %vm154, %v151, 0.0
        %v157 = vadd.f32 %v155, %v156
        %v158 = vsel %vm154, %v152, 0.0
        %v159 = vadd.f32 %v157, %v158
        %v160 = vsel %vm154, %v153, 0.0
        %v161 = vadd.f32 %v159, %v160
        %v162 = vmul.f32 %v150, %v150
        %v163 = vmul.f32 %v151, %v151
        %v164 = vmul.f32 %v152, %v152
        %v165 = vmul.f32 %v153, %v153
        %v166 = vsel %vm154, %v162, 0.0
        %v167 = vsel %vm154, %v163, 0.0
        %v168 = vadd.f32 %v166, %v167
        %v169 = vsel %vm154, %v164, 0.0
        %v170 = vadd.f32 %v168, %v169
        %v171 = vsel %vm154, %v165, 0.0
        %v172 = vadd.f32 %v170, %v171
        %v173 = vmul.f32 %v161, 0.25
        %v174 = vmul.f32 %v172, 0.25
        %v175 = vmul.f32 %v173, %v173
        %v176 = vsub.f32 %v174, %v175
        %v177 = vmax.f32 %v176, 0.0
        %v178 = vadd.f32 %v177, 1e-05
        %v179 = vrsqrt.pop %v178
        %v180 = vsub.f32 %v150, %v173
        %v181 = vsub.f32 %v151, %v173
        %v182 = vsub.f32 %v152, %v173
        %v183 = vsub.f32 %v153, %v173
        %v184 = vmul.f32 %v180, %v179
        %v185 = vmul.f32 %v181, %v179
        %v186 = vmul.f32 %v182, %v179
        %v187 = vmul.f32 %v183, %v179
        %v188 = vsel %vm154, %v184, 0.0
        %189 = vadd.xlane.f32.xlu0 %v188
        %v190 = vpop.xlane.xlu0 %189
        %v191 = vsel %vm154, %v185, 0.0
        %192 = vadd.xlane.f32.xlu0 %v191
        %v193 = vpop.xlane.xlu0 %192
        %v194 = vsel %vm154, %v186, 0.0
        %195 = vadd.xlane.f32.xlu0 %v194
        %v196 = vpop.xlane.xlu0 %195
        %v197 = vsel %vm154, %v187, 0.0
        %198 = vadd.xlane.f32.xlu0 %v197
        %v199 = vpop.xlane.xlu0 %198
        %v200 = vrot.slane %v190, 4
        %v201 = vadd.f32 %v190, %v200
        %v202 = vrot.slane %v201, 2
        %v203 = vadd.f32 %v201, %v202
        %v204 = vrot.slane %v203, 1
        %v205 = vadd.f32 %v203, %v204
        %v206 = vrot.slane %v193, 4
        %v207 = vadd.f32 %v193, %v206
        %v208 = vrot.slane %v207, 2
        %v209 = vadd.f32 %v207, %v208
        %v210 = vrot.slane %v209, 1
        %v211 = vadd.f32 %v209, %v210
        %v212 = vrot.slane %v196, 4
        %v213 = vadd.f32 %v196, %v212
        %v214 = vrot.slane %v213, 2
        %v215 = vadd.f32 %v213, %v214
        %v216 = vrot.slane %v215, 1
        %v217 = vadd.f32 %v215, %v216
        %v218 = vrot.slane %v199, 4
        %v219 = vadd.f32 %v199, %v218
        %v220 = vrot.slane %v219, 2
        %v221 = vadd.f32 %v219, %v220
        %v222 = vrot.slane %v221, 1
        %v223 = vadd.f32 %v221, %v222
        %p224 = scmp.eq.s32.totalorder %s20, 0
        // Predicated region
        $region29: #{tpu_custom_call.1} parent=23 // pred_check
          %p225 = pneg %p224
        $region30: #{tpu_custom_call.1} parent=23 // pred_check_branch
          %227 = sbr.rel (%p225) target = $region32
        $region31: #{tpu_custom_call.1} parent=23 // pred_region
          %vm228 = vcmask 0
          %229 = vst.msk [vmem:[%s149] sm:$0x1] %vm228, 0.0
          %230 = vst.msk [vmem:[%s149 + $0x1] sm:$0x1] %vm228, 0.0
          %231 = vst.msk [vmem:[%s149 + $0x2] sm:$0x1] %vm228, 0.0
          %232 = vst.msk [vmem:[%s149 + $0x3] sm:$0x1] %vm228, 0.0
        $region32: #{tpu_custom_call.1} parent=23 // pred_fallthru
          _
        %v233 = vld [vmem:[%s149] sm:$0x1]
        %v234 = vld [vmem:[%s149 + $0x1] sm:$0x1]
        %v235 = vld [vmem:[%s149 + $0x2] sm:$0x1]
        %v236 = vld [vmem:[%s149 + $0x3] sm:$0x1]
        %v237 = vadd.f32 %v233, %v205
        %v238 = vadd.f32 %v234, %v211
        %v239 = vadd.f32 %v235, %v217
        %v240 = vadd.f32 %v236, %v223
        %vm241 = vcmask 0
        %242 = vst.msk [vmem:[%s149] sm:$0x1] %vm241, %v237
        %243 = vst.msk [vmem:[%s149 + $0x1] sm:$0x1] %vm241, %v238
        %244 = vst.msk [vmem:[%s149 + $0x2] sm:$0x1] %vm241, %v239
        %245 = vst.msk [vmem:[%s149 + $0x3] sm:$0x1] %vm241, %v240
        %p246 = scmp.lt.s32.totalorder %s19, 1
        %s247 = scalar_select %p246, %s19, 1
        %s248 = smul.addr %s247, 4
        %s249 = scalar_lea.vmem %s1, %s248
        // Predicated region
        $region33: #{tpu_custom_call.1} parent=23 // pred_check
          %p250 = pneg %p73
        $region34: #{tpu_custom_call.1} parent=23 // pred_check_branch
          %252 = sbr.rel (%p250) target = $region36
        $region35: #{tpu_custom_call.1} parent=23 // pred_region
          _
        $region36: #{tpu_custom_call.1} parent=23 // pred_fallthru
          _
      $region24: #{tpu_custom_call.1} parent=5 // pred_fallthru
        _
      %p253 = scmp.le.s32.totalorder 2, %s10
      // Predicated region
      $region37: #{tpu_custom_call.1} parent=5 // pred_check
        %p254 = pneg %p253
      $region38: #{tpu_custom_call.1} parent=5 // pred_check_branch
        %256 = sbr.rel (%p254) target = $region40
      $region39: #{tpu_custom_call.1} parent=5 // pred_region
        %s257 = ssub.s32 %s10, 2
        // Predicated region
        $region41: #{tpu_custom_call.1} parent=39 // pred_check
          %p258 = pneg %p79
        $region42: #{tpu_custom_call.1} parent=39 // pred_check_branch
          %260 = sbr.rel (%p258) target = $region44
        $region43: #{tpu_custom_call.1} parent=39 // pred_region
          %p261 = scmp.lt.s32.totalorder %s21, 1
          %s262 = scalar_select %p261, %s21, 1
          %s263 = smul.addr %s262, 4
          %s264 = scalar_lea.vmem %s1, %s263
        $region44: #{tpu_custom_call.1} parent=39 // pred_fallthru
          _
      $region40: #{tpu_custom_call.1} parent=5 // pred_fallthru
        _
    $region6: #{tpu_custom_call.1} parent=1 // loop_footer
      %s14 = sadd.s32 1, %s10
    $region7: #{tpu_custom_call.1} parent=1 // loop_footer_branch
      %9 = sbr.rel target = $region3
    $region8: #{tpu_custom_call.1} parent=1 // loop_exit
      _
    %265 = vsyncpa [#allocation3], 1
    %s266 = scalar_lea.sflag [#allocation3], 1
    %267 = vsyncpa %s266, 1

</llo_original>
